<compile_context>
chip_gen: v7x
topology: tpu7x:2x2x1
jax: 0.10.0
libtpu: 0.0.40
codegen_flags: <defaults>
</compile_context>

<pallas_src>
import functools

import jax
import jax.numpy as jnp
from jax.experimental import pallas as pl
from jax.experimental.pallas import tpu as pltpu


def _round_up(x, m):
    return ((x + m - 1) // m) * m


def _patch_embed_kernel(p_ref, w_ref, b_ref, o_ref):
    # p_ref: (tm, K) f32 patches; w_ref: (K, tn) bf16; b_ref: (1, tn) f32; o_ref: (tm, tn)
    p = p_ref[...].astype(jnp.bfloat16)   # in-kernel cast: free-ish in a mem-bound kernel
    acc = jnp.dot(p, w_ref[...], preferred_element_type=jnp.float32)
    o_ref[...] = (acc + b_ref[...]).astype(o_ref.dtype)


def _choose_tm(M, tm_max):
    """Pick the M-tile size.

    Preference: exact divisor of M (no pad copy), multiple of 16 (bf16 sublane packing),
    >= 2 tiles (v7x megacore), as large as possible (amortize ~0.35 us per-step overhead).
    Falls back to a padded multiple-of-16 tile.
    """
    tm_max = max(16, min(tm_max, M))
    for align in (16, 8):
        divisors = [t for t in range(align, tm_max + 1, align) if M % t == 0]
        if divisors:
            tm = max(divisors)
            if M // tm < 2:
                two_plus = [t for t in divisors if M // t >= 2]
                if two_plus:
                    tm = max(two_plus)
            return tm, M
    tm = max(16, (tm_max // 16) * 16)
    tm = min(tm, _round_up(M, 16))
    return tm, _round_up(M, tm)


def patch_embed_forward(x, weight, bias, patch_size, *, tm_max=512,
                        weight_vmem_budget=8 << 20, step_vmem_budget=24 << 20):
    """
    x:      (B, C, H, W)  float32  (NCHW, like PyTorch)
    weight: (embed_dim, C, ph, pw)  (PyTorch Conv2d weight layout)
    bias:   (embed_dim,)
    returns (B, num_patches, embed_dim) in x.dtype   (norm_layer=None -> Identity)
    """
    B, C, H, W = x.shape
    ph, pw = patch_size
    assert H % ph == 0 and W % pw == 0
    gh, gw = H // ph, W // pw
    num_patches = gh * gw
    embed_dim = weight.shape[0]
    K = C * ph * pw
    M = B * num_patches

    # Patch unfold (pure layout). The (C, ph, pw) column order matches Conv2d weight
    # flattening so the matmul reproduces the conv exactly. allow_input_fusion below
    # lets XLA fold this producer into the Pallas input DMA instead of its own HBM pass.
    # TODO(synk): move the unfold fully in-kernel from a raw (1, C, ph, W) x block once
    # Mosaic lowers the 6-D relayout cheaply.
    patches = x.reshape(B, C, gh, ph, gw, pw)
    patches = patches.transpose(0, 2, 4, 1, 3, 5).reshape(M, K)

    w2d = weight.reshape(embed_dim, K).T.astype(jnp.bfloat16)   # (K, embed_dim), small
    b2d = bias.reshape(1, embed_dim).astype(jnp.float32)

    # N tiling: pad embed_dim to a lane multiple (unmasked vst); single N tile whenever
    # the whole weight slab fits comfortably in VMEM so the patch stream is read once.
    Np = _round_up(embed_dim, 128)
    if K * Np * 2 <= weight_vmem_budget:
        tn = Np
    else:
        tn = min(512, Np)
        Np = _round_up(Np, tn)
    if Np != embed_dim:
        w2d = jnp.pad(w2d, ((0, 0), (0, Np - embed_dim)))
        b2d = jnp.pad(b2d, ((0, 0), (0, Np - embed_dim)))

    # M tiling: VMEM-budgeted tm cap, then prefer an exact divisor of M (no pad copy).
    in_bytes = x.dtype.itemsize
    fixed = 2 * (K * tn * 2) + 2 * (tn * 4)            # weight + bias double buffers
    per_row = 2 * (K * in_bytes + tn * in_bytes)       # patches + output double buffers
    tm_cap = max(16, (step_vmem_budget - fixed) // per_row)
    tm, Mp = _choose_tm(M, min(tm_max, tm_cap))
    if Mp != M:
        patches = jnp.pad(patches, ((0, Mp - M), (0, 0)))

    # j (N tiles, usually extent 1) outer; i (M tiles) inner: the weight block index is
    # constant along the inner sweep so it is fetched once per N tile.
    grid = (Np // tn, Mp // tm)

    cost = pl.CostEstimate(
        flops=2 * Mp * K * Np,
        transcendentals=0,
        bytes_accessed=Mp * K * in_bytes + K * Np * 2 + Np * 4 + Mp * Np * in_bytes,
    )
    vmem_limit = int(min(64 << 20, max(32 << 20, fixed + tm * per_row + (4 << 20))))

    out = pl.pallas_call(
        _patch_embed_kernel,
        out_shape=jax.ShapeDtypeStruct((Mp, Np), x.dtype),
        grid_spec=pltpu.PrefetchScalarGridSpec(
            num_scalar_prefetch=0,
            grid=grid,
            in_specs=[
                pl.BlockSpec((tm, K), lambda j, i: (i, 0)),   # patches (streamed once)
                pl.BlockSpec((K, tn), lambda j, i: (0, j)),   # weight (const over i)
                pl.BlockSpec((1, tn), lambda j, i: (0, j)),   # bias
            ],
            out_specs=pl.BlockSpec((tm, tn), lambda j, i: (i, j)),
        ),
        compiler_params=pltpu.CompilerParams(
            dimension_semantics=("parallel", "parallel"),
            allow_input_fusion=[True, False, False],
            vmem_limit_bytes=vmem_limit,
        ),
        cost_estimate=cost,
    )(patches, w2d, b2d)

    out = out[:M, :embed_dim]
    return out.reshape(B, num_patches, embed_dim)


if __name__ == "__main__":
    # Small, forward-consistent shapes: img_size=16, patch_size=4, in_c=4, embed_dim=32.
    B, C, H, W = 2, 4, 16, 16
    patch_size = (4, 4)
    embed_dim = 32

    key = jax.random.PRNGKey(0)
    kx, kw, kb = jax.random.split(key, 3)

    x = jax.random.normal(kx, (B, C, H, W), dtype=jnp.float32)
    # Deterministic param init (Conv2d-like uniform fan-in scaling).
    fan_in = C * patch_size[0] * patch_size[1]
    bound = 1.0 / (fan_in ** 0.5)
    weight = jax.random.uniform(kw, (embed_dim, C, patch_size[0], patch_size[1]),
                                minval=-bound, maxval=bound, dtype=jnp.float32)
    bias = jax.random.uniform(kb, (embed_dim,), minval=-bound, maxval=bound,
                              dtype=jnp.float32)

    fwd = jax.jit(functools.partial(patch_embed_forward, patch_size=patch_size))
    out = fwd(x, weight, bias)
    out = jax.block_until_ready(out)

    # Reference: exact f32 conv (the PyTorch forward), NCHW.
    ref = jax.lax.conv_general_dilated(
        x, weight, window_strides=patch_size, padding="VALID",
        dimension_numbers=("NCHW", "OIHW", "NCHW"),
        precision=jax.lax.Precision.HIGHEST)
    ref = ref + bias.reshape(1, embed_dim, 1, 1)
    ref = ref.reshape(B, embed_dim, -1).transpose(0, 2, 1)  # flatten(2).transpose(1,2)

    num_patches = (H // patch_size[0]) * (W // patch_size[1])
    assert out.shape == (B, num_patches, embed_dim)
    # Tolerance sized for bf16 operand rounding (accumulation stays f32 in the kernel).
    err = float(jnp.max(jnp.abs(out - ref)))
    assert jnp.allclose(out, ref, atol=2e-2, rtol=2e-2), f"max abs err {err}"

    print("KERNEL_OK")
</pallas_src>

<mosaic_0001>
module attributes {stable_mosaic.version = 11 : i64} {
  func.func @_patch_embed_kernel(%arg0: i32, %arg1: i32, %arg2: memref<16x64xf32, #tpu.memory_space<vmem>>, %arg3: memref<64x128xbf16, #tpu.memory_space<vmem>>, %arg4: memref<1x128xf32, #tpu.memory_space<vmem>>, %arg5: memref<16x128xf32, #tpu.memory_space<vmem>>) attributes {dimension_semantics = [#tpu.dimension_semantics<parallel>, #tpu.dimension_semantics<parallel>], iteration_bounds = array<i64: 1, 2>, scalar_prefetch = 0 : i64, scratch_operands = 0 : i64, tpu.core_type = #tpu.core_type<tc>, window_params = [{transform_indices = @transform_0, window_bounds = array<i64: 16, 64>}, {transform_indices = @transform_1, window_bounds = array<i64: 64, 128>}, {transform_indices = @transform_2, window_bounds = array<i64: 1, 128>}, {transform_indices = @transform_3, window_bounds = array<i64: 16, 128>}]} {
    %c0 = arith.constant 0 : index
    %c0_0 = arith.constant 0 : index
    %0 = vector.load %arg2[%c0, %c0_0] : memref<16x64xf32, #tpu.memory_space<vmem>>, vector<16x64xf32>
    %1 = arith.truncf %0 : vector<16x64xf32> to vector<16x64xbf16>
    %c0_1 = arith.constant 0 : index
    %c0_2 = arith.constant 0 : index
    %2 = vector.load %arg3[%c0_1, %c0_2] : memref<64x128xbf16, #tpu.memory_space<vmem>>, vector<64x128xbf16>
    %cst = arith.constant dense<0.000000e+00> : vector<16x128xf32>
    %3 = tpu.matmul %1, %2, %cst {dimension_numbers = #tpu.dot_dimension_numbers<[1], [0], [0], [1], [0, 0, 1, 1], [], []>} : vector<16x64xbf16>, vector<64x128xbf16>, vector<16x128xf32> -> vector<16x128xf32>
    %c0_3 = arith.constant 0 : index
    %c0_4 = arith.constant 0 : index
    %4 = vector.load %arg4[%c0_3, %c0_4] : memref<1x128xf32, #tpu.memory_space<vmem>>, vector<1x128xf32>
    %5 = vector.broadcast %4 : vector<1x128xf32> to vector<16x128xf32>
    %6 = arith.addf %3, %5 : vector<16x128xf32>
    %c0_5 = arith.constant 0 : index
    %c0_6 = arith.constant 0 : index
    %7 = vector.load %arg5[%c0_5, %c0_6] : memref<16x128xf32, #tpu.memory_space<vmem>>, vector<16x128xf32>
    tpu.vector_store %arg5[%c0_5, %c0_6], %6 {strides = array<i32>} : memref<16x128xf32, #tpu.memory_space<vmem>>, vector<16x128xf32>,
    return
  }
  func.func @transform_0(%arg0: i32, %arg1: i32) -> (i32, i32) {
    %c0_i32 = arith.constant 0 : i32
    %c0_i32_0 = arith.constant 0 : i32
    return %arg1, %c0_i32 : i32, i32
  }
  func.func @transform_1(%arg0: i32, %arg1: i32) -> (i32, i32) {
    %c0_i32 = arith.constant 0 : i32
    %c0_i32_0 = arith.constant 0 : i32
    return %c0_i32, %arg0 : i32, i32
  }
  func.func @transform_2(%arg0: i32, %arg1: i32) -> (i32, i32) {
    %c0_i32 = arith.constant 0 : i32
    %c0_i32_0 = arith.constant 0 : i32
    return %c0_i32, %arg0 : i32, i32
  }
  func.func @transform_3(%arg0: i32, %arg1: i32) -> (i32, i32) {
    %c0_i32 = arith.constant 0 : i32
    return %arg1, %arg0 : i32, i32
  }
}

</mosaic_0001>

<llo_original>
// kernel: patch_embed_forward.1
$region0: #{patch_embed_forward.1}
  #allocation0 [shape = 'u32[]', space=smem, size = 0x4, offset = 0x4, fixed_abs, tag = 'smem constant byte address 0x4 - core index']
  #allocation1 [shape = 'u32[144,128]{1,0:T(1,128)}', space=vmem, size = 0x12000, scoped, tag = 'internal scratch']
  %s0 = inlined_call_operand.vmem [shape: f32[32,64], index: 0, kind: input, shape index: {}]
  %s1 = inlined_call_operand.vmem [shape: bf16[64,128], index: 1, kind: input, shape index: {}]
  %s2 = inlined_call_operand.vmem [shape: f32[1,128], index: 2, kind: input, shape index: {}]
  %s3 = inlined_call_operand.hbm [shape: f32[32,128], index: 3, kind: output, shape index: {}]
  %s4 = sld [smem:[#allocation0]]
  $region45: #{patch_embed_forward.1} parent=0
    _
  %s6 = ssub.s32 1, %s4
  %s7 = scalar_select 0, %s6, %s4
  $region1: #{patch_embed_forward.1} parent=0
    #allocation2 [shape = 'u8[16384]{0}', space=vmem, size = 0x4000, scoped, tag = 'output window, operand 0']
    #allocation3 [shape = 's32[2]{0}', space=sflag, size = 0x8, scoped, tag = 'scoped memory for patch_embed_forward.1']
    %8 = vsyncpa [#allocation3], 0
    %s9 = scalar_lea.sflag [#allocation3], 1
    %10 = vsyncpa %s9, 0
    loop: start=0, step=1, limit=4
    $region2: #{patch_embed_forward.1} parent=1 // loop_pre_header
      _
    $region3: #{patch_embed_forward.1} parent=1 // loop_header
      %s12 = sphi 0, %s16
      %p13 = scmp.ge.s32.totalorder %s12, 4
      %s19 = sphi 0, %s31
      %s20 = sphi 0, %s27
      %s21 = sphi 0, %s19
      %s22 = sphi 0, %s20
      %s23 = sphi 0, %s21
      %s24 = sphi 0, %s22
      %s34 = sphi 0, %s36
      %s37 = sphi 0, %s34
      %s38 = sphi 0, %s37
      %s54 = sphi 0, %s38
      %s60 = sphi 0, %s62
      %s63 = sphi 0, %s60
      %s64 = sphi 0, %s63
      %s80 = sphi 0, %s64
      %s86 = sphi 0, %s88
      %s89 = sphi 0, %s86
      %s90 = sphi 0, %s89
      %s106 = sphi 0, %s90
      %s114 = sphi 0, %s116
      %s117 = sphi 0, %s114
      %s118 = sphi 0, %s117
      %s134 = sphi 0, %s118
    $region4: #{patch_embed_forward.1} parent=1 // loop_header_branch
      %15 = sbr.rel (%p13) target = $region8
    $region5: #{patch_embed_forward.1} parent=1 // loop_body
      %s17 = ssub.s32 %s12, 1
      %s18 = ssub.s32 %s12, 2
      %s25 = sadd.s32 1, %s20
      %p26 = scmp.ge.s32.totalorder %s25, 2
      %s27 = scalar_select %p26, 0, %s25
      %s28 = sadd.s32 1, %s19
      %s29 = scalar_select %p26, %s28, %s19
      %p30 = scmp.ge.s32.totalorder %s29, 1
      %s31 = scalar_select %p30, 0, %s29
      %s32 = ssub.s32 %s20, %s27
      %p33 = scmp.eq.s32.totalorder %s32, 0
      %s35 = sadd.s32 %s34, 1
      %s36 = scalar_select %p33, %s34, %s35
      %p39 = pneg %p33
      %p40 = scmp.eq.s32.totalorder %s12, 1
      %p41 = por %p39, %p40
      %p42 = scmp.ne.s32.totalorder %s34, %s37
      %p43 = scmp.eq.s32.totalorder %s12, 0
      %p44 = por %p42, %p43
      %p45 = scmp.ne.s32.totalorder %s34, %s37
      %p46 = scmp.eq.s32.totalorder %s17, 1
      %p47 = por %p45, %p46
      %p48 = scmp.ne.s32.totalorder %s37, %s38
      %p49 = scmp.eq.s32.totalorder %s17, 0
      %p50 = por %p48, %p49
      %p51 = scmp.ne.s32.totalorder %s37, %s38
      %p52 = scmp.eq.s32.totalorder %s18, 1
      %p53 = por %p51, %p52
      %p55 = scmp.ne.s32.totalorder %s38, %s54
      %p56 = scmp.eq.s32.totalorder %s18, 0
      %p57 = por %p55, %p56
      %s58 = ssub.s32 %s19, %s31
      %p59 = scmp.eq.s32.totalorder %s58, 0
      %s61 = sadd.s32 %s60, 1
      %s62 = scalar_select %p59, %s60, %s61
      %p65 = pneg %p59
      %p66 = scmp.eq.s32.totalorder %s12, 1
      %p67 = por %p65, %p66
      %p68 = scmp.ne.s32.totalorder %s60, %s63
      %p69 = scmp.eq.s32.totalorder %s12, 0
      %p70 = por %p68, %p69
      %p71 = scmp.ne.s32.totalorder %s60, %s63
      %p72 = scmp.eq.s32.totalorder %s17, 1
      %p73 = por %p71, %p72
      %p74 = scmp.ne.s32.totalorder %s63, %s64
      %p75 = scmp.eq.s32.totalorder %s17, 0
      %p76 = por %p74, %p75
      %p77 = scmp.ne.s32.totalorder %s63, %s64
      %p78 = scmp.eq.s32.totalorder %s18, 1
      %p79 = por %p77, %p78
      %p81 = scmp.ne.s32.totalorder %s64, %s80
      %p82 = scmp.eq.s32.totalorder %s18, 0
      %p83 = por %p81, %p82
      %s84 = ssub.s32 %s19, %s31
      %p85 = scmp.eq.s32.totalorder %s84, 0
      %s87 = sadd.s32 %s86, 1
      %s88 = scalar_select %p85, %s86, %s87
      %p91 = pneg %p85
      %p92 = scmp.eq.s32.totalorder %s12, 1
      %p93 = por %p91, %p92
      %p94 = scmp.ne.s32.totalorder %s86, %s89
      %p95 = scmp.eq.s32.totalorder %s12, 0
      %p96 = por %p94, %p95
      %p97 = scmp.ne.s32.totalorder %s86, %s89
      %p98 = scmp.eq.s32.totalorder %s17, 1
      %p99 = por %p97, %p98
      %p100 = scmp.ne.s32.totalorder %s89, %s90
      %p101 = scmp.eq.s32.totalorder %s17, 0
      %p102 = por %p100, %p101
      %p103 = scmp.ne.s32.totalorder %s89, %s90
      %p104 = scmp.eq.s32.totalorder %s18, 1
      %p105 = por %p103, %p104
      %p107 = scmp.ne.s32.totalorder %s90, %s106
      %p108 = scmp.eq.s32.totalorder %s18, 0
      %p109 = por %p107, %p108
      %s110 = ssub.s32 %s20, %s27
      %s111 = ssub.s32 %s19, %s31
      %s112 = sor.u32 %s110, %s111
      %p113 = scmp.eq.s32.totalorder %s112, 0
      %s115 = sadd.s32 %s114, 1
      %s116 = scalar_select %p113, %s114, %s115
      %p119 = pneg %p113
      %p120 = scmp.eq.s32.totalorder %s12, 1
      %p121 = por %p119, %p120
      %p122 = scmp.ne.s32.totalorder %s114, %s117
      %p123 = scmp.eq.s32.totalorder %s12, 0
      %p124 = por %p122, %p123
      %p125 = scmp.ne.s32.totalorder %s114, %s117
      %p126 = scmp.eq.s32.totalorder %s17, 1
      %p127 = por %p125, %p126
      %p128 = scmp.ne.s32.totalorder %s117, %s118
      %p129 = scmp.eq.s32.totalorder %s17, 0
      %p130 = por %p128, %p129
      %p131 = scmp.ne.s32.totalorder %s117, %s118
      %p132 = scmp.eq.s32.totalorder %s18, 1
      %p133 = por %p131, %p132
      %p135 = scmp.ne.s32.totalorder %s118, %s134
      %p136 = scmp.eq.s32.totalorder %s18, 0
      %p137 = por %p135, %p136
      %p138 = scmp.le.s32.totalorder 1, %s12
      %p139 = scmp.lt.s32.totalorder %s12, 3
      %p140 = pnand %p138, %p139
      %p141 = pneg %p140
      // Predicated region
      $region9: #{patch_embed_forward.1} parent=5 // pred_check
        _
      $region10: #{patch_embed_forward.1} parent=5 // pred_check_branch
        %143 = sbr.rel (%p140) target = $region12
      $region11: #{patch_embed_forward.1} parent=5 // pred_region
        %s144 = ssub.s32 %s12, 1
        // Predicated region
        $region13: #{patch_embed_forward.1} parent=11 // pred_check
          %p145 = pneg %p76
        $region14: #{patch_embed_forward.1} parent=11 // pred_check_branch
          %147 = sbr.rel (%p145) target = $region16
        $region15: #{patch_embed_forward.1} parent=11 // pred_region
          %p148 = scmp.lt.s32.totalorder %s21, 0
          %s149 = scalar_select %p148, %s21, 0
          %s150 = smul.addr %s149, 4
          %s151 = scalar_lea.vmem %s1, %s150
        $region16: #{patch_embed_forward.1} parent=11 // pred_fallthru
          _
        // Predicated region
        $region17: #{patch_embed_forward.1} parent=11 // pred_check
          %p152 = pneg %p102
        $region18: #{patch_embed_forward.1} parent=11 // pred_check_branch
          %154 = sbr.rel (%p152) target = $region20
        $region19: #{patch_embed_forward.1} parent=11 // pred_region
          %p155 = scmp.lt.s32.totalorder %s21, 0
          %s156 = scalar_select %p155, %s21, 0
          %s157 = scalar_lea.vmem %s2, %s156
        $region20: #{patch_embed_forward.1} parent=11 // pred_fallthru
          _
      $region12: #{patch_embed_forward.1} parent=5 // pred_fallthru
        _
      %p158 = scmp.lt.s32.totalorder %s12, 2
      // Predicated region
      $region21: #{patch_embed_forward.1} parent=5 // pred_check
        %p159 = pneg %p158
      $region22: #{patch_embed_forward.1} parent=5 // pred_check_branch
        %161 = sbr.rel (%p159) target = $region24
      $region23: #{patch_embed_forward.1} parent=5 // pred_region
        // Predicated region
        $region25: #{patch_embed_forward.1} parent=23 // pred_check
          %p162 = pneg %p44
        $region26: #{patch_embed_forward.1} parent=23 // pred_check_branch
          %164 = sbr.rel (%p162) target = $region28
        $region27: #{patch_embed_forward.1} parent=23 // pred_region
          %s165 = smul.u32 2, %s20
          %p166 = scmp.lt.s32.totalorder %s165, 3
          %s167 = scalar_select %p166, %s165, 3
          %s168 = smul.addr %s167, 8
          %s169 = scalar_lea.vmem %s0, %s168
          %s170 = smul.u32 2, %s20
        $region28: #{patch_embed_forward.1} parent=23 // pred_fallthru
          _
      $region24: #{patch_embed_forward.1} parent=5 // pred_fallthru
        _
      %p171 = scmp.le.s32.totalorder 1, %s12
      %p172 = scmp.lt.s32.totalorder %s12, 3
      %p173 = pnand %p171, %p172
      %p174 = pneg %p173
      // Predicated region
      $region29: #{patch_embed_forward.1} parent=5 // pred_check
        _
      $region30: #{patch_embed_forward.1} parent=5 // pred_check_branch
        %176 = sbr.rel (%p173) target = $region32
      $region31: #{patch_embed_forward.1} parent=5 // pred_region
        %s177 = ssub.s32 %s12, 1
        %s178 = smul.u32 2, %s22
        %p179 = scmp.lt.s32.totalorder %s178, 3
        %s180 = scalar_select %p179, %s178, 3
        %s181 = smul.addr %s180, 8
        %s182 = scalar_lea.vmem %s0, %s181
        %p183 = pneg %p50
        %p184 = pneg %p47
        %p185 = scmp.lt.s32.totalorder %s21, 0
        %s186 = scalar_select %p185, %s21, 0
        %s187 = smul.addr %s186, 4
        %s188 = scalar_lea.vmem %s1, %s187
        %p189 = pneg %p76
        %p190 = pneg %p73
        %p191 = scmp.lt.s32.totalorder %s21, 0
        %s192 = scalar_select %p191, %s21, 0
        %s193 = scalar_lea.vmem %s2, %s192
        %p194 = pneg %p102
        %p195 = pneg %p99
        %p196 = pneg %p130
        %p197 = pneg %p127
        %s198 = sand.u32 %s117, 1
        %s199 = scalar_lea.sflag [#allocation3], %s198
        %s200 = sand.u32 %s117, 1
        %s201 = smul.addr %s200, 16
        %s202 = scalar_lea.vmem [#allocation2], %s201
        %s203 = smul.u32 2, %s22
        %p204 = scmp.lt.s32.totalorder %s203, 3
        %s205 = scalar_select %p204, %s203, 3
        %s206 = smul.addr %s205, 8
        %s207 = scalar_lea.vmem %s0, %s206
        %s208 = smul.u32 2, %s22
        %p209 = scmp.lt.s32.totalorder %s21, 0
        %s210 = scalar_select %p209, %s21, 0
        %s211 = smul.addr %s210, 4
        %s212 = scalar_lea.vmem %s1, %s211
        %p213 = scmp.lt.s32.totalorder %s21, 0
        %s214 = scalar_select %p213, %s21, 0
        %s215 = scalar_lea.vmem %s2, %s214
        %s216 = smul.u32 2, %s22
        %v218 = vld [vmem:[%s207] sm:$0xff]
        %v219 = vld [vmem:[%s207 + $0x8] sm:$0xff]
        %v220 = vpack.c.bf16 %v219, %v218
        %v221 = vld [vmem:[%s212] sm:$0xf]
        %v222 = vld [vmem:[%s212 + $0x4] sm:$0xf]
        %v223 = vld [vmem:[%s212 + $0x8] sm:$0xf]
        %v224 = vld [vmem:[%s212 + $0xc] sm:$0xf]
        %v225 = vld [vmem:[%s212 + $0x10] sm:$0xf]
        %v226 = vld [vmem:[%s212 + $0x14] sm:$0xf]
        %v227 = vld [vmem:[%s212 + $0x18] sm:$0xf]
        %v228 = vld [vmem:[%s212 + $0x1c] sm:$0xf]
        %v229 = vld [vmem:[%s215] sm:$0x1]
        %v231 = vlaneseq
        %v232 = vshrl.u32 %v231, 7
        %v233 = vsub.s32 0, %v232
        %v234 = vrot.slane %v229, %v233
        %v244 = vunpack.c.l.b16 %v221
        %v245 = vunpack.c.l.b16 %v222
        %v246 = vunpack.c.l.b16 %v223
        %v247 = vunpack.c.l.b16 %v224
        %v248 = vunpack.c.l.b16 %v225
        %v249 = vunpack.c.l.b16 %v226
        %v250 = vunpack.c.l.b16 %v227
        %v251 = vunpack.c.l.b16 %v228
        %v252 = vpack.c.b16 %v245, %v244
        %v253 = vpack.c.b16 %v247, %v246
        %v254 = vpack.c.b16 %v249, %v248
        %v255 = vpack.c.b16 %v251, %v250
        %vm260 = vcmask 523264
        %v262 = vsel %vm260, %v220, 0
        %264 = vmatprep.subr.bf16.mxu0 0
        %265 = vmatpush1.bf16.msra.mxu0 %v252
        %266 = vmatprep.subr.bf16.mxu0 0
        %267 = vmatpush1.bf16.msra.mxu0 %v253
        %268 = vmatprep.subr.bf16.mxu0 0
        %269 = vmatpush1.bf16.msra.mxu0 %v254
        %270 = vmatprep.subr.bf16.mxu0 0
        %271 = vmatpush1.bf16.msra.mxu0 %v255
        %272 = vmatprep.subr.bf16.mxu0 0
        %273 = vmatpush1.bf16.msra.mxu0 0
        %274 = vmatprep.subr.bf16.mxu0 0
        %275 = vmatpush1.bf16.msra.mxu0 0
        %276 = vmatprep.subr.bf16.mxu0 0
        %277 = vmatpush1.bf16.msra.mxu0 0
        %278 = vmatprep.subr.bf16.mxu0 0
        %279 = vmatpush1.bf16.msra.mxu0 0
        %280 = vmatprep.subr.bf16.mxu0 0
        %281 = vmatpush1.bf16.msra.mxu0 0
        %282 = vmatprep.subr.bf16.mxu0 0
        %283 = vmatpush1.bf16.msra.mxu0 0
        %284 = vmatprep.subr.bf16.mxu0 0
        %285 = vmatpush1.bf16.msra.mxu0 0
        %286 = vmatprep.subr.bf16.mxu0 0
        %287 = vmatpush1.bf16.msra.mxu0 0
        %288 = vmatprep.subr.bf16.mxu0 0
        %289 = vmatpush1.bf16.msra.mxu0 0
        %290 = vmatprep.subr.bf16.mxu0 0
        %291 = vmatpush1.bf16.msra.mxu0 0
        %292 = vmatprep.subr.bf16.mxu0 0
        %293 = vmatpush1.bf16.msra.mxu0 0
        %294 = vmatprep.subr.bf16.mxu0 0
        %295 = vmatpush1.bf16.msra.mxu0 0
        %296 = vmatprep.mubr.bf16.mxu0 0
        %297 = vmatmul.mubr.bf16.gmra.mrb[0].mxu0 %v262
        %v298 = vpop.f32.mrb[0].mxu0
        %v299 = vadd.f32 %v234, %v298
        %v300 = vpop.f32.mrb[0].mxu0
        %v301 = vpop.f32.mrb[0].mxu0
        %v302 = vadd.f32 %v234, %v301
        %v303 = vpop.f32.mrb[0].mxu0
        %304 = vdwg.mxu0
        %305 = vst [vmem:[%s202] sm:$0xff] %v299
        %306 = vst [vmem:[%s202 + $0x8] sm:$0xff] %v302
        %s307 = sand.u32 %s117, 1
        %s308 = scalar_lea.sflag [#allocation3], %s307
        %s309 = sand.u32 %s117, 1
        %s310 = smul.addr %s309, 16
        %s311 = scalar_lea.vmem [#allocation2], %s310
        // Predicated region
        $region33: #{patch_embed_forward.1} parent=31 // pred_check
          %p312 = pneg %p127
        $region34: #{patch_embed_forward.1} parent=31 // pred_check_branch
          %314 = sbr.rel (%p312) target = $region36
        $region35: #{patch_embed_forward.1} parent=31 // pred_region
          %s315 = smul.u32 2, %s22
          %s317 = ssub.s32 256, 256
          %318 = vsyncadd %s308, %s317
          %s319 = sadd.s32 %s21, %s315
          %s320 = smul.addr %s319, 128
          %s321 = scalar_lea.hbm %s3, %s320
          %s322 = sshll.u32 %s311, 4
          %s323 = int_to_ptr.vmem [resolvable:$true] %s322
          %328 = dma.vmem_to_hbm [thread:$0]  %s323, 256, %s321, %s308, 128, 128, 8
        $region36: #{patch_embed_forward.1} parent=31 // pred_fallthru
          _
      $region32: #{patch_embed_forward.1} parent=5 // pred_fallthru
        _
      %p329 = scmp.le.s32.totalorder 2, %s12
      // Predicated region
      $region37: #{patch_embed_forward.1} parent=5 // pred_check
        %p330 = pneg %p329
      $region38: #{patch_embed_forward.1} parent=5 // pred_check_branch
        %332 = sbr.rel (%p330) target = $region40
      $region39: #{patch_embed_forward.1} parent=5 // pred_region
        %s333 = ssub.s32 %s12, 2
        // Predicated region
        $region41: #{patch_embed_forward.1} parent=39 // pred_check
          %p334 = pneg %p133
        $region42: #{patch_embed_forward.1} parent=39 // pred_check_branch
          %336 = sbr.rel (%p334) target = $region44
        $region43: #{patch_embed_forward.1} parent=39 // pred_region
          %s337 = sand.u32 %s118, 1
          %s338 = scalar_lea.sflag [#allocation3], %s337
          %s339 = sand.u32 %s118, 1
          %s340 = smul.addr %s339, 16
          %s341 = scalar_lea.vmem [#allocation2], %s340
          %342 = dma.done %s338, 256
        $region44: #{patch_embed_forward.1} parent=39 // pred_fallthru
          _
      $region40: #{patch_embed_forward.1} parent=5 // pred_fallthru
        _
    $region6: #{patch_embed_forward.1} parent=1 // loop_footer
      %s16 = sadd.s32 1, %s12
    $region7: #{patch_embed_forward.1} parent=1 // loop_footer_branch
      %11 = sbr.rel target = $region3
    $region8: #{patch_embed_forward.1} parent=1 // loop_exit
      _
    %343 = vsyncpa [#allocation3], 1
    %s344 = scalar_lea.sflag [#allocation3], 1
    %345 = vsyncpa %s344, 1

</llo_original>
